<compile_context>
chip_gen: v6e
topology: v6e:2x2x1
jax: 0.10.0
libtpu: 0.0.40
codegen_flags: <defaults>
</compile_context>

<pallas_src>
import functools

import jax
import jax.numpy as jnp
from jax.experimental import pallas as pl
from jax.experimental.pallas import tpu as pltpu


# ------------------------------ helpers ---------------------------------------

def _round_up(n, m):
    return ((n + m - 1) // m) * m


def _celu(y):
    # CELU with alpha=1: where(y > 0, y, exp(y) - 1).
    # Clamp the exp argument so the unselected branch never overflows.
    return jnp.where(y > 0.0, y, jnp.exp(jnp.minimum(y, 0.0)) - 1.0)


# ------------------------------ fused kernel ----------------------------------

def _fused_mlp_kernel(*refs, n_layers):
    # refs = (x_ref, w1, b1, w2, b2, ..., wL, bL, out_ref); all whole-array
    # VMEM refs (no grid, no pipelining needed at this size).
    x_ref = refs[0]
    out_ref = refs[-1]
    h = x_ref[...]
    for l in range(n_layers):
        w = refs[1 + 2 * l][...]          # (in, out)  -- pre-transposed
        b = refs[2 + 2 * l][...]          # (Bp, out)  -- pre-broadcast: VPU add
        y = jnp.dot(h, w, preferred_element_type=jnp.float32) + b   # MXU
        if l < n_layers - 1:
            y = _celu(y)                                            # VPU + EUP
        h = y
    out_ref[...] = h


# --------------------------- one-time param prep -------------------------------

def prepare_params(params, batch):
    """Hoisted out of the forward pass.  Casts everything to f32, keeps weights
    as (in, out), pre-broadcasts biases to (Bp, out) and builds a CostEstimate.
    No 128-padding of feature dims (whole-array blocks are exempt from the
    (8,128) rule and the weights are tiny)."""
    Bp = _round_up(max(batch, 1), 8)
    n_layers = len(params)
    dims = [params[0][0].shape[0]] + [w.shape[1] for (w, _) in params]

    flat = []
    flops = 0
    bytes_acc = 0
    for (w, b) in params:
        din, dout = w.shape
        w32 = jnp.asarray(w, jnp.float32)
        b32 = jnp.asarray(
            jnp.broadcast_to(jnp.asarray(b, jnp.float32).reshape(1, dout), (Bp, dout))
        )
        flat += [w32, b32]
        flops += 2 * Bp * din * dout + Bp * dout
        bytes_acc += 4 * (din * dout + Bp * dout)
    bytes_acc += 4 * Bp * (dims[0] + dims[-1])
    transcendentals = Bp * sum(dims[1:-1])          # one exp per hidden activation

    cost = pl.CostEstimate(flops=flops,
                           transcendentals=transcendentals,
                           bytes_accessed=bytes_acc)
    return {
        "Bp": Bp,
        "n_layers": n_layers,
        "d_out": dims[-1],
        "flat": tuple(flat),
        "cost": cost,
    }


# ------------------------------ forward pass -----------------------------------

def net_celu_forward(x, prepped):
    """x: (B, Din) float32.  prepped: output of prepare_params (device arrays)."""
    B = x.shape[0]
    Bp = prepped["Bp"]
    n_layers = prepped["n_layers"]

    x = x.astype(jnp.float32)
    if B != Bp:                      # tiny activation pad only, params untouched
        x = jnp.pad(x, ((0, Bp - B), (0, 0)))

    n_in = 1 + 2 * n_layers
    vmem = pltpu.MemorySpace.VMEM
    out = pl.pallas_call(
        functools.partial(_fused_mlp_kernel, n_layers=n_layers),
        out_shape=jax.ShapeDtypeStruct((Bp, prepped["d_out"]), jnp.float32),
        in_specs=[pl.BlockSpec(memory_space=vmem)] * n_in,
        out_specs=pl.BlockSpec(memory_space=vmem),
        cost_estimate=prepped["cost"],
    )(x, *prepped["flat"])

    return out if B == Bp else out[:B]


# --------------------------- parameter init -----------------------------------

def init_params(key, layers):
    """Mirrors Net_celu_RandInit.__init__: weight ~ N(0, 1/sqrt(fan_in)),
    bias = PyTorch Linear default U(-1/sqrt(fan_in), 1/sqrt(fan_in)).
    Weights stored pre-transposed as (in, out)."""
    params = []
    for fan_in, fan_out in zip(layers, layers[1:]):
        key, kw, kb = jax.random.split(key, 3)
        std = 1.0 / (fan_in ** 0.5)
        w = std * jax.random.normal(kw, (fan_in, fan_out), jnp.float32)
        bnd = 1.0 / (fan_in ** 0.5)
        b = jax.random.uniform(kb, (1, fan_out), jnp.float32, -bnd, bnd)
        params.append((w, b))
    return params


# ------------------------- pure-JAX reference ----------------------------------

def net_celu_ref(x, params):
    L = len(params)
    for l, (w, b) in enumerate(params):
        y = x @ w + b
        if l < L - 1:
            y = jnp.where(y > 0.0, y, jnp.exp(jnp.minimum(y, 0.0)) - 1.0)
        x = y
    return x


# ----------------------------------- main --------------------------------------

if __name__ == "__main__":
    layers = [16, 32, 32, 8]   # Layers argument of Net_celu_RandInit
    batch = 8

    key = jax.random.PRNGKey(0)
    key, kx = jax.random.split(key)
    x = jax.random.normal(kx, (batch, layers[0]), jnp.float32)

    params = init_params(key, layers)
    prepped = prepare_params(params, batch)     # one-time prep, off the hot path

    out = net_celu_forward(x, prepped)
    out = jax.block_until_ready(out)

    ref = net_celu_ref(x, params)
    assert out.shape == (batch, layers[-1])
    assert jnp.allclose(out, ref, atol=1e-5, rtol=1e-5), "mismatch vs pure-JAX reference"

    print("KERNEL_OK")
</pallas_src>

<mosaic_0001>
module attributes {stable_mosaic.version = 11 : i64} {
  func.func @_fused_mlp_kernel(%arg0: memref<8x16xf32, #tpu.memory_space<vmem>>, %arg1: memref<16x32xf32, #tpu.memory_space<vmem>>, %arg2: memref<8x32xf32, #tpu.memory_space<vmem>>, %arg3: memref<32x32xf32, #tpu.memory_space<vmem>>, %arg4: memref<8x32xf32, #tpu.memory_space<vmem>>, %arg5: memref<32x8xf32, #tpu.memory_space<vmem>>, %arg6: memref<8x8xf32, #tpu.memory_space<vmem>>, %arg7: memref<8x8xf32, #tpu.memory_space<vmem>>) attributes {dimension_semantics = [], scalar_prefetch = 0 : i64, scratch_operands = 0 : i64, tpu.core_type = #tpu.core_type<tc>} {
    %c0 = arith.constant 0 : index
    %c0_0 = arith.constant 0 : index
    %0 = vector.load %arg0[%c0, %c0_0] : memref<8x16xf32, #tpu.memory_space<vmem>>, vector<8x16xf32>
    %c0_1 = arith.constant 0 : index
    %c0_2 = arith.constant 0 : index
    %1 = vector.load %arg1[%c0_1, %c0_2] : memref<16x32xf32, #tpu.memory_space<vmem>>, vector<16x32xf32>
    %c0_3 = arith.constant 0 : index
    %c0_4 = arith.constant 0 : index
    %2 = vector.load %arg2[%c0_3, %c0_4] : memref<8x32xf32, #tpu.memory_space<vmem>>, vector<8x32xf32>
    %cst = arith.constant dense<0.000000e+00> : vector<8x32xf32>
    %3 = tpu.matmul %0, %1, %cst {dimension_numbers = #tpu.dot_dimension_numbers<[1], [0], [0], [1], [0, 0, 1, 1], [], []>} : vector<8x16xf32>, vector<16x32xf32>, vector<8x32xf32> -> vector<8x32xf32>
    %4 = arith.addf %3, %2 : vector<8x32xf32>
    %cst_5 = arith.constant 0.000000e+00 : f32
    %5 = vector.broadcast %cst_5 : f32 to vector<8x32xf32>
    %6 = arith.cmpf ogt, %4, %5 : vector<8x32xf32>
    %cst_6 = arith.constant 0.000000e+00 : f32
    %7 = vector.broadcast %cst_6 : f32 to vector<8x32xf32>
    %8 = arith.minimumf %4, %7 : vector<8x32xf32>
    %9 = math.exp %8 : vector<8x32xf32>
    %cst_7 = arith.constant 1.000000e+00 : f32
    %10 = vector.broadcast %cst_7 : f32 to vector<8x32xf32>
    %11 = arith.subf %9, %10 : vector<8x32xf32>
    %12 = arith.select %6, %4, %11 : vector<8x32xi1>, vector<8x32xf32>
    %c0_8 = arith.constant 0 : index
    %c0_9 = arith.constant 0 : index
    %13 = vector.load %arg3[%c0_8, %c0_9] : memref<32x32xf32, #tpu.memory_space<vmem>>, vector<32x32xf32>
    %c0_10 = arith.constant 0 : index
    %c0_11 = arith.constant 0 : index
    %14 = vector.load %arg4[%c0_10, %c0_11] : memref<8x32xf32, #tpu.memory_space<vmem>>, vector<8x32xf32>
    %cst_12 = arith.constant dense<0.000000e+00> : vector<8x32xf32>
    %15 = tpu.matmul %12, %13, %cst_12 {dimension_numbers = #tpu.dot_dimension_numbers<[1], [0], [0], [1], [0, 0, 1, 1], [], []>} : vector<8x32xf32>, vector<32x32xf32>, vector<8x32xf32> -> vector<8x32xf32>
    %16 = arith.addf %15, %14 : vector<8x32xf32>
    %cst_13 = arith.constant 0.000000e+00 : f32
    %17 = vector.broadcast %cst_13 : f32 to vector<8x32xf32>
    %18 = arith.cmpf ogt, %16, %17 : vector<8x32xf32>
    %cst_14 = arith.constant 0.000000e+00 : f32
    %19 = vector.broadcast %cst_14 : f32 to vector<8x32xf32>
    %20 = arith.minimumf %16, %19 : vector<8x32xf32>
    %21 = math.exp %20 : vector<8x32xf32>
    %cst_15 = arith.constant 1.000000e+00 : f32
    %22 = vector.broadcast %cst_15 : f32 to vector<8x32xf32>
    %23 = arith.subf %21, %22 : vector<8x32xf32>
    %24 = arith.select %18, %16, %23 : vector<8x32xi1>, vector<8x32xf32>
    %c0_16 = arith.constant 0 : index
    %c0_17 = arith.constant 0 : index
    %25 = vector.load %arg5[%c0_16, %c0_17] : memref<32x8xf32, #tpu.memory_space<vmem>>, vector<32x8xf32>
    %c0_18 = arith.constant 0 : index
    %c0_19 = arith.constant 0 : index
    %26 = vector.load %arg6[%c0_18, %c0_19] : memref<8x8xf32, #tpu.memory_space<vmem>>, vector<8x8xf32>
    %cst_20 = arith.constant dense<0.000000e+00> : vector<8x8xf32>
    %27 = tpu.matmul %24, %25, %cst_20 {dimension_numbers = #tpu.dot_dimension_numbers<[1], [0], [0], [1], [0, 0, 1, 1], [], []>} : vector<8x32xf32>, vector<32x8xf32>, vector<8x8xf32> -> vector<8x8xf32>
    %28 = arith.addf %27, %26 : vector<8x8xf32>
    %c0_21 = arith.constant 0 : index
    %c0_22 = arith.constant 0 : index
    %29 = vector.load %arg7[%c0_21, %c0_22] : memref<8x8xf32, #tpu.memory_space<vmem>>, vector<8x8xf32>
    tpu.vector_store %arg7[%c0_21, %c0_22], %28 {strides = array<i32>} : memref<8x8xf32, #tpu.memory_space<vmem>>, vector<8x8xf32>,
    return
  }
}

</mosaic_0001>

<llo_original>
// kernel: tpu_custom_call.1
$region0: #{tpu_custom_call.1}
  #allocation0 [shape = 'u32[]', space=smem, size = 0x4, offset = 0x4, fixed_abs, tag = 'smem constant byte address 0x4 - core index']
  #allocation1 [shape = 'u32[144,128]{1,0:T(1,128)}', space=vmem, size = 0x12000, scoped, tag = 'internal scratch']
  %s0 = inlined_call_operand.vmem [shape: f32[8,16], index: 0, kind: input, shape index: {}]
  %s1 = inlined_call_operand.hbm [shape: f32[16,32], index: 1, kind: input, shape index: {}]
  %s2 = inlined_call_operand.hbm [shape: f32[8,32], index: 2, kind: input, shape index: {}]
  %s3 = inlined_call_operand.vmem [shape: f32[32,32], index: 3, kind: input, shape index: {}]
  %s4 = inlined_call_operand.hbm [shape: f32[8,32], index: 4, kind: input, shape index: {}]
  %s5 = inlined_call_operand.vmem [shape: f32[32,8], index: 5, kind: input, shape index: {}]
  %s6 = inlined_call_operand.hbm [shape: f32[8,8], index: 6, kind: input, shape index: {}]
  %s7 = inlined_call_operand.hbm [shape: f32[8,8], index: 7, kind: output, shape index: {}]
  %s8 = sld [smem:[#allocation0]]
  $region54: #{tpu_custom_call.1} parent=0
    _
  %s10 = ssub.s32 1, %s8
  %s11 = scalar_select 0, %s10, %s8
  $region1: #{tpu_custom_call.1} parent=0
    #allocation2 [shape = 'u8[8192]{0}', space=vmem, size = 0x2000, scoped, tag = 'input window, operand 1, single buffered']
    #allocation3 [shape = 's32[1]{0}', space=sflag, size = 0x4, scoped, tag = 'scoped memory for tpu_custom_call.1']
    #allocation4 [shape = 's32[1]{0}', space=sflag, size = 0x4, scoped, tag = 'scoped memory for tpu_custom_call.1']
    #allocation5 [shape = 'u8[4096]{0}', space=vmem, size = 0x1000, scoped, tag = 'input window, operand 2, single buffered']
    #allocation6 [shape = 's32[1]{0}', space=sflag, size = 0x4, scoped, tag = 'scoped memory for tpu_custom_call.1']
    #allocation7 [shape = 'u8[4096]{0}', space=vmem, size = 0x1000, scoped, tag = 'input window, operand 4, single buffered']
    #allocation8 [shape = 'u8[4096]{0}', space=vmem, size = 0x1000, scoped, tag = 'input window, operand 6, single buffered']
    #allocation9 [shape = 's32[1]{0}', space=sflag, size = 0x4, scoped, tag = 'scoped memory for tpu_custom_call.1']
    #allocation10 [shape = 'u8[4096]{0}', space=vmem, size = 0x1000, scoped, tag = 'output window, operand 0, single buffered']
    %12 = vsyncpa [#allocation3], 0
    %13 = vsyncpa [#allocation6], 0
    %14 = vsyncpa [#allocation9], 0
    %15 = vsyncpa [#allocation4], 0
    // Predicated region
    $region2: #{tpu_custom_call.1} parent=1 // pred_check
      _
    $region3: #{tpu_custom_call.1} parent=1 // pred_check_branch
      %17 = sbr.rel (0) target = $region5
    $region4: #{tpu_custom_call.1} parent=1 // pred_region
      _
    $region5: #{tpu_custom_call.1} parent=1 // pred_fallthru
      _
    // Predicated region
    $region6: #{tpu_custom_call.1} parent=1 // pred_check
      _
    $region7: #{tpu_custom_call.1} parent=1 // pred_check_branch
      %19 = sbr.rel (0) target = $region9
    $region8: #{tpu_custom_call.1} parent=1 // pred_region
      %s21 = ssub.s32 256, 256
      %22 = vsyncadd [#allocation3], %s21
      %s23 = sshll.u32 [#allocation2], 4
      %s24 = int_to_ptr.vmem [resolvable:$true] %s23
      %29 = dma.hbm_to_vmem [thread:$0]  %s1, 256, %s24, [#allocation3], 128, 128, 8
    $region9: #{tpu_custom_call.1} parent=1 // pred_fallthru
      _
    // Predicated region
    $region10: #{tpu_custom_call.1} parent=1 // pred_check
      _
    $region11: #{tpu_custom_call.1} parent=1 // pred_check_branch
      %31 = sbr.rel (0) target = $region13
    $region12: #{tpu_custom_call.1} parent=1 // pred_region
      %s33 = ssub.s32 128, 128
      %34 = vsyncadd [#allocation6], %s33
      %s36 = sshll.u32 [#allocation5], 4
      %s37 = int_to_ptr.vmem [resolvable:$true] %s36
      %39 = dma.hbm_to_vmem [thread:$0]  %s2, 128, %s37, [#allocation6]
    $region13: #{tpu_custom_call.1} parent=1 // pred_fallthru
      _
    // Predicated region
    $region14: #{tpu_custom_call.1} parent=1 // pred_check
      _
    $region15: #{tpu_custom_call.1} parent=1 // pred_check_branch
      %41 = sbr.rel (0) target = $region17
    $region16: #{tpu_custom_call.1} parent=1 // pred_region
      _
    $region17: #{tpu_custom_call.1} parent=1 // pred_fallthru
      _
    // Predicated region
    $region18: #{tpu_custom_call.1} parent=1 // pred_check
      _
    $region19: #{tpu_custom_call.1} parent=1 // pred_check_branch
      %43 = sbr.rel (0) target = $region21
    $region20: #{tpu_custom_call.1} parent=1 // pred_region
      %s45 = ssub.s32 128, 128
      %46 = vsyncadd [#allocation6], %s45
      %s48 = sshll.u32 [#allocation7], 4
      %s49 = int_to_ptr.vmem [resolvable:$true] %s48
      %51 = dma.hbm_to_vmem [thread:$0]  %s4, 128, %s49, [#allocation6]
    $region21: #{tpu_custom_call.1} parent=1 // pred_fallthru
      _
    // Predicated region
    $region22: #{tpu_custom_call.1} parent=1 // pred_check
      _
    $region23: #{tpu_custom_call.1} parent=1 // pred_check_branch
      %53 = sbr.rel (0) target = $region25
    $region24: #{tpu_custom_call.1} parent=1 // pred_region
      _
    $region25: #{tpu_custom_call.1} parent=1 // pred_fallthru
      _
    // Predicated region
    $region26: #{tpu_custom_call.1} parent=1 // pred_check
      _
    $region27: #{tpu_custom_call.1} parent=1 // pred_check_branch
      %55 = sbr.rel (0) target = $region29
    $region28: #{tpu_custom_call.1} parent=1 // pred_region
      %s57 = ssub.s32 128, 128
      %58 = vsyncadd [#allocation9], %s57
      %s60 = sshll.u32 [#allocation8], 4
      %s61 = int_to_ptr.vmem [resolvable:$true] %s60
      %63 = dma.hbm_to_vmem [thread:$0]  %s6, 128, %s61, [#allocation9]
    $region29: #{tpu_custom_call.1} parent=1 // pred_fallthru
      _
    // Predicated region
    $region30: #{tpu_custom_call.1} parent=1 // pred_check
      _
    $region31: #{tpu_custom_call.1} parent=1 // pred_check_branch
      %65 = sbr.rel (0) target = $region33
    $region32: #{tpu_custom_call.1} parent=1 // pred_region
      %66 = dma.done [#allocation3], 256
    $region33: #{tpu_custom_call.1} parent=1 // pred_fallthru
      _
    // Predicated region
    $region34: #{tpu_custom_call.1} parent=1 // pred_check
      _
    $region35: #{tpu_custom_call.1} parent=1 // pred_check_branch
      %68 = sbr.rel (0) target = $region37
    $region36: #{tpu_custom_call.1} parent=1 // pred_region
      %69 = dma.done [#allocation6], 128
    $region37: #{tpu_custom_call.1} parent=1 // pred_fallthru
      _
    // Predicated region
    $region38: #{tpu_custom_call.1} parent=1 // pred_check
      _
    $region39: #{tpu_custom_call.1} parent=1 // pred_check_branch
      %71 = sbr.rel (0) target = $region41
    $region40: #{tpu_custom_call.1} parent=1 // pred_region
      %72 = dma.done [#allocation6], 128
    $region41: #{tpu_custom_call.1} parent=1 // pred_fallthru
      _
    // Predicated region
    $region42: #{tpu_custom_call.1} parent=1 // pred_check
      _
    $region43: #{tpu_custom_call.1} parent=1 // pred_check_branch
      %74 = sbr.rel (0) target = $region45
    $region44: #{tpu_custom_call.1} parent=1 // pred_region
      %75 = dma.done [#allocation9], 128
    $region45: #{tpu_custom_call.1} parent=1 // pred_fallthru
      _
    %v76 = vld [vmem:[%s0] sm:$0xff]
    %v77 = vld [vmem:[#allocation2] sm:$0xff]
    %v78 = vld [vmem:[#allocation2 + $0x8] sm:$0xff]
    %v79 = vld [vmem:[#allocation5] sm:$0xff]
    %vm80 = vcmask 130048
    %v82 = vsel %vm80, %v76, 0
    %84 = vmatprep.subr.mxu0 0.0
    %85 = vmatpush1.msra.mxu0 0.0
    %86 = vmatprep.subr.mxu0 0.0
    %87 = vmatpush1.msra.mxu0 0.0
    %88 = vmatprep.subr.mxu0 0.0
    %89 = vmatpush1.msra.mxu0 0.0
    %90 = vmatprep.subr.mxu0 0.0
    %91 = vmatpush1.msra.mxu0 0.0
    %92 = vmatprep.subr.mxu0 0.0
    %93 = vmatpush1.msra.mxu0 0.0
    %94 = vmatprep.subr.mxu0 0.0
    %95 = vmatpush1.msra.mxu0 0.0
    %96 = vmatprep.subr.mxu0 0.0
    %97 = vmatpush1.msra.mxu0 0.0
    %98 = vmatprep.subr.mxu0 0.0
    %99 = vmatpush1.msra.mxu0 0.0
    %100 = vmatprep.subr.mxu0 0.0
    %101 = vmatpush1.msra.mxu0 0.0
    %102 = vmatprep.subr.mxu0 0.0
    %103 = vmatpush1.msra.mxu0 0.0
    %104 = vmatprep.subr.mxu0 0.0
    %105 = vmatpush1.msra.mxu0 0.0
    %106 = vmatprep.subr.mxu0 0.0
    %107 = vmatpush1.msra.mxu0 0.0
    %108 = vmatprep.subr.mxu0 0.0
    %109 = vmatpush1.msra.mxu0 0.0
    %110 = vmatprep.subr.mxu0 0.0
    %111 = vmatpush1.msra.mxu0 0.0
    %112 = vmatprep.subr.mxu0 0.0
    %113 = vmatpush1.msra.mxu0 %v78
    %114 = vmatprep.subr.mxu0 0.0
    %115 = vmatpush1.msra.mxu0 %v77
    %116 = vmatprep.subr.mxu0 0.0
    %117 = vmatpush2.msra.mxu0 0.0
    %118 = vmatprep.subr.mxu0 0.0
    %119 = vmatpush2.msra.mxu0 0.0
    %120 = vmatprep.subr.mxu0 0.0
    %121 = vmatpush2.msra.mxu0 0.0
    %122 = vmatprep.subr.mxu0 0.0
    %123 = vmatpush2.msra.mxu0 0.0
    %124 = vmatprep.subr.mxu0 0.0
    %125 = vmatpush2.msra.mxu0 0.0
    %126 = vmatprep.subr.mxu0 0.0
    %127 = vmatpush2.msra.mxu0 0.0
    %128 = vmatprep.subr.mxu0 0.0
    %129 = vmatpush2.msra.mxu0 0.0
    %130 = vmatprep.subr.mxu0 0.0
    %131 = vmatpush2.msra.mxu0 0.0
    %132 = vmatprep.subr.mxu0 0.0
    %133 = vmatpush2.msra.mxu0 0.0
    %134 = vmatprep.subr.mxu0 0.0
    %135 = vmatpush2.msra.mxu0 0.0
    %136 = vmatprep.subr.mxu0 0.0
    %137 = vmatpush2.msra.mxu0 0.0
    %138 = vmatprep.subr.mxu0 0.0
    %139 = vmatpush2.msra.mxu0 0.0
    %140 = vmatprep.subr.mxu0 0.0
    %141 = vmatpush2.msra.mxu0 0.0
    %142 = vmatprep.subr.mxu0 0.0
    %143 = vmatpush2.msra.mxu0 0.0
    %144 = vmatprep.subr.mxu0 0.0
    %145 = vmatpush2.msra.mxu0 0.0
    %146 = vmatprep.subr.mxu0 0.0
    %147 = vmatpush2.msra.mxu0 0.0
    %148 = vmatprep.mubr.f32.mxu0 0.0
    %149 = vmatmul.mubr.f32.gmra.mxu0 %v82
    %v150 = vpop.f32.mrf.mxu0
    %v151 = vadd.f32 %v79, %v150
    %v152 = vpop.f32.mrf.mxu0
    %153 = vdwg.mxu0
    %vm154 = vcmp.gt.f32.partialorder %v151, 0.0
    %v155 = vmin.f32 %v151, 0.0
    %v156 = vmul.f32 %v155, 1.442695
    %v157 = vpow.pop %v156
    %v158 = vsub.f32 %v157, 1.0
    %v159 = vsel %vm154, %v151, %v158
    %v160 = vld [vmem:[%s3] sm:$0xff]
    %v161 = vld [vmem:[%s3 + $0x8] sm:$0xff]
    %v162 = vld [vmem:[%s3 + $0x10] sm:$0xff]
    %v163 = vld [vmem:[%s3 + $0x18] sm:$0xff]
    %v164 = vld [vmem:[#allocation7] sm:$0xff]
    %vm165 = vcmask 261120
    %v167 = vsel %vm165, %v159, 0
    %169 = vmatprep.subr.mxu0 0.0
    %170 = vmatpush1.msra.mxu0 0.0
    %171 = vmatprep.subr.mxu0 0.0
    %172 = vmatpush1.msra.mxu0 0.0
    %173 = vmatprep.subr.mxu0 0.0
    %174 = vmatpush1.msra.mxu0 0.0
    %175 = vmatprep.subr.mxu0 0.0
    %176 = vmatpush1.msra.mxu0 0.0
    %177 = vmatprep.subr.mxu0 0.0
    %178 = vmatpush1.msra.mxu0 0.0
    %179 = vmatprep.subr.mxu0 0.0
    %180 = vmatpush1.msra.mxu0 0.0
    %181 = vmatprep.subr.mxu0 0.0
    %182 = vmatpush1.msra.mxu0 0.0
    %183 = vmatprep.subr.mxu0 0.0
    %184 = vmatpush1.msra.mxu0 0.0
    %185 = vmatprep.subr.mxu0 0.0
    %186 = vmatpush1.msra.mxu0 0.0
    %187 = vmatprep.subr.mxu0 0.0
    %188 = vmatpush1.msra.mxu0 0.0
    %189 = vmatprep.subr.mxu0 0.0
    %190 = vmatpush1.msra.mxu0 0.0
    %191 = vmatprep.subr.mxu0 0.0
    %192 = vmatpush1.msra.mxu0 0.0
    %193 = vmatprep.subr.mxu0 0.0
    %194 = vmatpush1.msra.mxu0 %v163
    %195 = vmatprep.subr.mxu0 0.0
    %196 = vmatpush1.msra.mxu0 %v162
    %197 = vmatprep.subr.mxu0 0.0
    %198 = vmatpush1.msra.mxu0 %v161
    %199 = vmatprep.subr.mxu0 0.0
    %200 = vmatpush1.msra.mxu0 %v160
    %201 = vmatprep.subr.mxu0 0.0
    %202 = vmatpush2.msra.mxu0 0.0
    %203 = vmatprep.subr.mxu0 0.0
    %204 = vmatpush2.msra.mxu0 0.0
    %205 = vmatprep.subr.mxu0 0.0
    %206 = vmatpush2.msra.mxu0 0.0
    %207 = vmatprep.subr.mxu0 0.0
    %208 = vmatpush2.msra.mxu0 0.0
    %209 = vmatprep.subr.mxu0 0.0
    %210 = vmatpush2.msra.mxu0 0.0
    %211 = vmatprep.subr.mxu0 0.0
    %212 = vmatpush2.msra.mxu0 0.0
    %213 = vmatprep.subr.mxu0 0.0
    %214 = vmatpush2.msra.mxu0 0.0
    %215 = vmatprep.subr.mxu0 0.0
    %216 = vmatpush2.msra.mxu0 0.0
    %217 = vmatprep.subr.mxu0 0.0
    %218 = vmatpush2.msra.mxu0 0.0
    %219 = vmatprep.subr.mxu0 0.0
    %220 = vmatpush2.msra.mxu0 0.0
    %221 = vmatprep.subr.mxu0 0.0
    %222 = vmatpush2.msra.mxu0 0.0
    %223 = vmatprep.subr.mxu0 0.0
    %224 = vmatpush2.msra.mxu0 0.0
    %225 = vmatprep.subr.mxu0 0.0
    %226 = vmatpush2.msra.mxu0 0.0
    %227 = vmatprep.subr.mxu0 0.0
    %228 = vmatpush2.msra.mxu0 0.0
    %229 = vmatprep.subr.mxu0 0.0
    %230 = vmatpush2.msra.mxu0 0.0
    %231 = vmatprep.subr.mxu0 0.0
    %232 = vmatpush2.msra.mxu0 0.0
    %233 = vmatprep.mubr.f32.mxu0 0.0
    %234 = vmatmul.mubr.f32.gmra.mxu0 %v167
    %v235 = vpop.f32.mrf.mxu0
    %v236 = vadd.f32 %v164, %v235
    %v237 = vpop.f32.mrf.mxu0
    %238 = vdwg.mxu0
    %vm239 = vcmp.gt.f32.partialorder %v236, 0.0
    %v240 = vmin.f32 %v236, 0.0
    %v241 = vmul.f32 %v240, 1.442695
    %v242 = vpow.pop %v241
    %v243 = vsub.f32 %v242, 1.0
    %v244 = vsel %vm239, %v236, %v243
    %v245 = vld [vmem:[%s5] sm:$0xff]
    %v246 = vld [vmem:[%s5 + $0x8] sm:$0xff]
    %v247 = vld [vmem:[%s5 + $0x10] sm:$0xff]
    %v248 = vld [vmem:[%s5 + $0x18] sm:$0xff]
    %v249 = vld [vmem:[#allocation8] sm:$0xff]
    %v251 = vsel %vm165, %v244, 0
    %253 = vmatprep.subr.mxu0 0.0
    %254 = vmatpush1.msra.mxu0 0.0
    %255 = vmatprep.subr.mxu0 0.0
    %256 = vmatpush1.msra.mxu0 0.0
    %257 = vmatprep.subr.mxu0 0.0
    %258 = vmatpush1.msra.mxu0 0.0
    %259 = vmatprep.subr.mxu0 0.0
    %260 = vmatpush1.msra.mxu0 0.0
    %261 = vmatprep.subr.mxu0 0.0
    %262 = vmatpush1.msra.mxu0 0.0
    %263 = vmatprep.subr.mxu0 0.0
    %264 = vmatpush1.msra.mxu0 0.0
    %265 = vmatprep.subr.mxu0 0.0
    %266 = vmatpush1.msra.mxu0 0.0
    %267 = vmatprep.subr.mxu0 0.0
    %268 = vmatpush1.msra.mxu0 0.0
    %269 = vmatprep.subr.mxu0 0.0
    %270 = vmatpush1.msra.mxu0 0.0
    %271 = vmatprep.subr.mxu0 0.0
    %272 = vmatpush1.msra.mxu0 0.0
    %273 = vmatprep.subr.mxu0 0.0
    %274 = vmatpush1.msra.mxu0 0.0
    %275 = vmatprep.subr.mxu0 0.0
    %276 = vmatpush1.msra.mxu0 0.0
    %277 = vmatprep.subr.mxu0 0.0
    %278 = vmatpush1.msra.mxu0 %v248
    %279 = vmatprep.subr.mxu0 0.0
    %280 = vmatpush1.msra.mxu0 %v247
    %281 = vmatprep.subr.mxu0 0.0
    %282 = vmatpush1.msra.mxu0 %v246
    %283 = vmatprep.subr.mxu0 0.0
    %284 = vmatpush1.msra.mxu0 %v245
    %285 = vmatprep.subr.mxu0 0.0
    %286 = vmatpush2.msra.mxu0 0.0
    %287 = vmatprep.subr.mxu0 0.0
    %288 = vmatpush2.msra.mxu0 0.0
    %289 = vmatprep.subr.mxu0 0.0
    %290 = vmatpush2.msra.mxu0 0.0
    %291 = vmatprep.subr.mxu0 0.0
    %292 = vmatpush2.msra.mxu0 0.0
    %293 = vmatprep.subr.mxu0 0.0
    %294 = vmatpush2.msra.mxu0 0.0
    %295 = vmatprep.subr.mxu0 0.0
    %296 = vmatpush2.msra.mxu0 0.0
    %297 = vmatprep.subr.mxu0 0.0
    %298 = vmatpush2.msra.mxu0 0.0
    %299 = vmatprep.subr.mxu0 0.0
    %300 = vmatpush2.msra.mxu0 0.0
    %301 = vmatprep.subr.mxu0 0.0
    %302 = vmatpush2.msra.mxu0 0.0
    %303 = vmatprep.subr.mxu0 0.0
    %304 = vmatpush2.msra.mxu0 0.0
    %305 = vmatprep.subr.mxu0 0.0
    %306 = vmatpush2.msra.mxu0 0.0
    %307 = vmatprep.subr.mxu0 0.0
    %308 = vmatpush2.msra.mxu0 0.0
    %309 = vmatprep.subr.mxu0 0.0
    %310 = vmatpush2.msra.mxu0 0.0
    %311 = vmatprep.subr.mxu0 0.0
    %312 = vmatpush2.msra.mxu0 0.0
    %313 = vmatprep.subr.mxu0 0.0
    %314 = vmatpush2.msra.mxu0 0.0
    %315 = vmatprep.subr.mxu0 0.0
    %316 = vmatpush2.msra.mxu0 0.0
    %317 = vmatprep.mubr.f32.mxu0 0.0
    %318 = vmatmul.mubr.f32.gmra.mxu0 %v251
    %v319 = vpop.f32.mrf.mxu0
    %v320 = vadd.f32 %v249, %v319
    %v321 = vpop.f32.mrf.mxu0
    %322 = vdwg.mxu0
    %vm323 = vcmask 64512
    %324 = vst.msk [vmem:[#allocation10] sm:$0xff] %vm323, %v320
    // Predicated region
    $region46: #{tpu_custom_call.1} parent=1 // pred_check
      _
    $region47: #{tpu_custom_call.1} parent=1 // pred_check_branch
      %326 = sbr.rel (0) target = $region49
    $region48: #{tpu_custom_call.1} parent=1 // pred_region
      %s328 = ssub.s32 128, 128
      %329 = vsyncadd [#allocation4], %s328
      %s331 = sshll.u32 [#allocation10], 4
      %s332 = int_to_ptr.vmem [resolvable:$true] %s331
      %334 = dma.vmem_to_hbm [thread:$0]  %s332, 128, %s7, [#allocation4]
    $region49: #{tpu_custom_call.1} parent=1 // pred_fallthru
      _
    // Predicated region
    $region50: #{tpu_custom_call.1} parent=1 // pred_check
      _
    $region51: #{tpu_custom_call.1} parent=1 // pred_check_branch
      %336 = sbr.rel (0) target = $region53
    $region52: #{tpu_custom_call.1} parent=1 // pred_region
      %337 = dma.done [#allocation4], 128
    $region53: #{tpu_custom_call.1} parent=1 // pred_fallthru
      _
    %338 = vsyncpa [#allocation3], 1
    %339 = vsyncpa [#allocation6], 1
    %340 = vsyncpa [#allocation9], 1
    %341 = vsyncpa [#allocation4], 1

</llo_original>
